<compile_context>
chip_gen: v7x
topology: tpu7x:2x2x1
jax: 0.10.0
libtpu: 0.0.40
codegen_flags: <defaults>
</compile_context>

<pallas_src>
import functools
import math

import jax
import jax.numpy as jnp
from jax.experimental import pallas as pl
from jax.experimental.pallas import tpu as pltpu

_MiB = 1024 * 1024


def _round_up(n, m):
    return ((n + m - 1) // m) * m


def _device_kind():
    try:
        return jax.devices()[0].device_kind.lower()
    except Exception:
        return ""


def _vmem_capacity_bytes():
    """Per-TensorCore VMEM capacity with conservative fallbacks."""
    kind = _device_kind()
    cap = 0
    try:
        cap = int(pltpu.get_tpu_info().vmem_capacity_bytes)
    except Exception:
        cap = 0
    if cap <= 0:
        cap = 64 * _MiB if ('v7' in kind or '7x' in kind) else 128 * _MiB
    if 'v7' in kind or '7x' in kind:
        cap = min(cap, 64 * _MiB)   # 64 MiB per TensorCore on v7x
    return cap


def _spec(shape, index_map, bufs=None):
    """BlockSpec helper; pipeline_mode is a narrow, best-effort hint."""
    if bufs is None:
        return pl.BlockSpec(shape, index_map)
    try:
        return pl.BlockSpec(shape, index_map, pipeline_mode=pl.Buffered(bufs))
    except TypeError:
        return pl.BlockSpec(shape, index_map)


def _mlp_kernel(*refs, n_hidden):
    """Full MLP for one tile of rows.

    refs (n_hidden > 0):
      xz_ref (TR, d_in), w0_ref (d_in, Hp), b0_ref (1, Hp),
      wh_ref (n_hidden, Hp, Hp), bh_ref (n_hidden, 1, Hp),
      wo_ref (Hp, Ys), bo_ref (1, Ys), out_ref (TR, Ys)
    When n_hidden == 0, wh_ref/bh_ref are omitted.
    """
    if n_hidden > 0:
        (xz_ref, w0_ref, b0_ref, wh_ref, bh_ref, wo_ref, bo_ref, out_ref) = refs
    else:
        (xz_ref, w0_ref, b0_ref, wo_ref, bo_ref, out_ref) = refs
        wh_ref = bh_ref = None

    # Input layer: concat(x, z) @ w0 (concat done once on the host).
    h = (jnp.dot(xz_ref[...], w0_ref[...], preferred_element_type=jnp.float32)
         + b0_ref[...])
    h = jnp.maximum(h, 0.0)

    # Hidden layers (n_hidden is a compile-time constant -> static unroll).
    for i in range(n_hidden):
        h = jnp.dot(h.astype(wh_ref.dtype), wh_ref[i],
                    preferred_element_type=jnp.float32) + bh_ref[i]
        h = jnp.maximum(h, 0.0)

    # Output layer (no activation).
    out_ref[...] = (jnp.dot(h.astype(wo_ref.dtype), wo_ref[...],
                            preferred_element_type=jnp.float32)
                    + bo_ref[...]).astype(out_ref.dtype)


def _pick_tile_rows(rows, d_in, h_pad, y_store, n_hidden, mm_bytes,
                    budget_bytes, io_bufs):
    """Largest row tile whose VMEM working set fits an explicit budget."""
    d_in_lanes = _round_up(d_in, 128)     # narrow tiles still occupy 128 lanes
    y_lanes = _round_up(y_store, 128)

    # Grid-invariant weights/biases are single-buffered (pl.Buffered(1)).
    weight_bytes = (_round_up(d_in, 8) * h_pad * mm_bytes
                    + n_hidden * h_pad * h_pad * mm_bytes
                    + h_pad * y_lanes * mm_bytes)
    bias_bytes = 8 * 4 * (h_pad * (1 + n_hidden) + y_lanes)   # (1,H) pads to 8 sublanes
    resident = weight_bytes + bias_bytes

    # Per-row: buffered, lane-padded I/O streams + f32 activation working set
    # (h + one matmul temp) + a bf16 copy of h when casting.
    per_row = (io_bufs * d_in_lanes * mm_bytes
               + io_bufs * y_lanes * 4
               + 2 * h_pad * 4
               + (h_pad * 2 if mm_bytes == 2 else 0))

    tile = 8
    for cand in (4096, 2048, 1024, 512, 256, 128, 64, 32, 16, 8):
        if resident + cand * per_row <= budget_bytes:
            tile = cand
            break
    # Guarantee >= 2 grid steps so v7x's second TensorCore gets work
    # (negligible extra per-step overhead on single-TC chips).
    if rows > 8:
        tile = min(tile, _round_up(pl.cdiv(rows, 2), 8))
    tile = max(8, min(tile, _round_up(rows, 8)))
    return tile, resident + tile * per_row


def mlp_concat_predictor(x_dict, z_dict, params, *, x_keys=('x',),
                         z_keys=('z',), y_key='y', use_bf16=True):
    """JAX/Pallas equivalent of MLPConcatPredictor.forward."""
    x = jnp.concatenate([x_dict[k] for k in x_keys], axis=-1)
    z = jnp.concatenate([z_dict[k] for k in z_keys], axis=-1)
    samples, tasks, x_dim = x.shape
    z_dim = z.shape[-1]
    rows = samples * tasks
    d_in = x_dim + z_dim

    mm_dtype = jnp.bfloat16 if use_bf16 else jnp.float32
    mm_bytes = 2 if use_bf16 else 4

    # One (rows, d_in) input stream: the host concat is negligible at small
    # d_in and avoids two narrow lane-padded DMA streams per tile.
    xz2d = jnp.concatenate(
        [x.reshape(rows, x_dim), z.reshape(rows, z_dim)], axis=-1).astype(mm_dtype)

    w0 = params['w0']
    b0 = jnp.asarray(params['b0']).reshape(1, -1)
    wo = params['wo']
    bo = jnp.asarray(params['bo']).reshape(1, -1)
    wh = params.get('wh')
    bh = params.get('bh')
    h_dim = w0.shape[1]
    y_dim = wo.shape[1]
    n_hidden = 0 if wh is None else wh.shape[0]

    kind = _device_kind()
    # Lane-dense hidden dim; v6e/v7x MXUs are 2x256x256, so fill the array for
    # large hidden dims.  Zero padding is inert through bias(0)+ReLU.
    big_mxu = any(t in kind for t in ('v6', 'v7', '7x'))
    h_mult = 256 if (h_dim > 128 and big_mxu) else 128
    h_pad = _round_up(h_dim, h_mult)

    # Small y_dim: store at true width (masked vst) and skip the wrapper
    # slice pass; padded lane-dense store only when y_dim is already wide.
    y_store = y_dim if y_dim < 64 else _round_up(y_dim, 128)

    w0p = jnp.pad(w0, ((0, 0), (0, h_pad - h_dim))).astype(mm_dtype)
    b0p = jnp.pad(b0, ((0, 0), (0, h_pad - h_dim))).astype(jnp.float32)
    wop = jnp.pad(wo, ((0, h_pad - h_dim), (0, y_store - y_dim))).astype(mm_dtype)
    bop = jnp.pad(bo, ((0, 0), (0, y_store - y_dim))).astype(jnp.float32)
    if n_hidden > 0:
        whp = jnp.pad(
            wh, ((0, 0), (0, h_pad - h_dim), (0, h_pad - h_dim))).astype(mm_dtype)
        bhp = jnp.pad(
            jnp.asarray(bh).reshape(n_hidden, 1, -1),
            ((0, 0), (0, 0), (0, h_pad - h_dim))).astype(jnp.float32)

    # Generation-aware VMEM budget / limit (per TensorCore).
    vmem_cap = _vmem_capacity_bytes()
    vmem_budget = int(vmem_cap * 0.72)
    vmem_limit = int(vmem_cap * 0.82)

    # Shallow / mem-bound config: deeper buffering on the row streams.
    shallow = (n_hidden == 0 and h_pad <= 256)
    io_bufs = 3 if shallow else 2

    tile_rows, _ = _pick_tile_rows(
        rows, d_in, h_pad, y_store, n_hidden, mm_bytes, vmem_budget, io_bufs)
    grid = (pl.cdiv(rows, tile_rows),)   # ragged last tile handled by Pallas

    # TODO(synk): when the (n_hidden, h_pad, h_pad) weight slab exceeds ~half
    # the VMEM budget (hits first on v7x's 64 MiB), stream hidden-layer
    # weights with pltpu.emit_pipeline over the layer axis instead of
    # shrinking tile_rows.
    in_specs = [
        _spec((tile_rows, d_in), lambda i: (i, 0), bufs=io_bufs),
        _spec((d_in, h_pad), lambda i: (0, 0), bufs=1),
        _spec((1, h_pad), lambda i: (0, 0), bufs=1),
    ]
    inputs = [xz2d, w0p, b0p]
    if n_hidden > 0:
        in_specs += [
            _spec((n_hidden, h_pad, h_pad), lambda i: (0, 0, 0), bufs=1),
            _spec((n_hidden, 1, h_pad), lambda i: (0, 0, 0), bufs=1),
        ]
        inputs += [whp, bhp]
    in_specs += [
        _spec((h_pad, y_store), lambda i: (0, 0), bufs=1),
        _spec((1, y_store), lambda i: (0, 0), bufs=1),
    ]
    inputs += [wop, bop]

    flops = 2 * rows * (d_in * h_pad + n_hidden * h_pad * h_pad + h_pad * y_store)
    bytes_accessed = (rows * d_in * mm_bytes
                      + (d_in * h_pad + n_hidden * h_pad * h_pad
                         + h_pad * y_store) * mm_bytes
                      + (h_pad * (1 + n_hidden) + y_store) * 4
                      + rows * y_store * 4)
    cost = pl.CostEstimate(flops=flops, transcendentals=0,
                           bytes_accessed=bytes_accessed)

    out2d = pl.pallas_call(
        functools.partial(_mlp_kernel, n_hidden=n_hidden),
        out_shape=jax.ShapeDtypeStruct((rows, y_store), jnp.float32),
        grid_spec=pltpu.PrefetchScalarGridSpec(
            num_scalar_prefetch=0,
            grid=grid,
            in_specs=in_specs,
            out_specs=_spec((tile_rows, y_store), lambda i: (i, 0), bufs=io_bufs),
        ),
        compiler_params=pltpu.CompilerParams(
            dimension_semantics=("parallel",),
            vmem_limit_bytes=vmem_limit),
        cost_estimate=cost,
    )(*inputs)

    y2d = out2d if y_store == y_dim else out2d[:, :y_dim]
    y = y2d.reshape(samples, tasks, y_dim)
    return {y_key: y}


def init_params(key, x_dim, z_dim, h_dim, y_dim, n_layers):
    """Deterministic parameter init (matches nn.Linear shapes; synthetic values)."""
    if n_layers < 2:
        raise ValueError('n_layers must be at least 2')
    n_hidden = n_layers - 2
    keys = jax.random.split(key, 6)
    d_in = x_dim + z_dim

    def uni(k, shape, fan_in):
        bound = 1.0 / math.sqrt(fan_in)
        return jax.random.uniform(k, shape, jnp.float32, -bound, bound)

    params = {
        'w0': uni(keys[0], (d_in, h_dim), d_in),
        'b0': uni(keys[1], (1, h_dim), d_in),
        'wo': uni(keys[4], (h_dim, y_dim), h_dim),
        'bo': uni(keys[5], (1, y_dim), h_dim),
    }
    if n_hidden > 0:
        params['wh'] = uni(keys[2], (n_hidden, h_dim, h_dim), h_dim)
        params['bh'] = uni(keys[3], (n_hidden, 1, h_dim), h_dim)
    else:
        params['wh'] = jnp.zeros((0, h_dim, h_dim), jnp.float32)
        params['bh'] = jnp.zeros((0, 1, h_dim), jnp.float32)
    return params


def reference_forward(x_dict, z_dict, params, *, x_keys=('x',), z_keys=('z',)):
    """Plain-JAX reference for correctness check."""
    x = jnp.concatenate([x_dict[k] for k in x_keys], axis=-1)
    z = jnp.concatenate([z_dict[k] for k in z_keys], axis=-1)
    h = jnp.concatenate([x, z], axis=-1).astype(jnp.float32)
    h = jnp.maximum(h @ params['w0'] + params['b0'][0], 0.0)
    for i in range(params['wh'].shape[0]):
        h = jnp.maximum(h @ params['wh'][i] + params['bh'][i, 0], 0.0)
    return h @ params['wo'] + params['bo'][0]


if __name__ == "__main__":
    # Small shapes consistent with the module's (samples, tasks, feat) convention.
    samples, tasks = 2, 8
    x_dim, z_dim, y_dim, h_dim = 4, 4, 3, 32

    key = jax.random.PRNGKey(0)
    kx, kz, kp, kp2 = jax.random.split(key, 4)

    x = {'x': jax.random.normal(kx, (samples, tasks, x_dim), jnp.float32)}
    z = {'z': jax.random.normal(kz, (samples, tasks, z_dim), jnp.float32)}

    # Deep config: n_layers=3 (one hidden layer).
    params = init_params(kp, x_dim, z_dim, h_dim, y_dim, n_layers=3)
    with jax.default_matmul_precision("highest"):
        y_ref = reference_forward(x, z, params)

    # Exact f32 path: tight tolerance.
    y_f32 = jax.block_until_ready(
        mlp_concat_predictor(x, z, params, use_bf16=False)['y'])
    assert y_f32.shape == (samples, tasks, y_dim)
    assert jnp.allclose(y_f32, y_ref, atol=1e-4, rtol=1e-4)

    # Default bf16-operand path (f32 accumulation): looser tolerance.
    y_bf16 = jax.block_until_ready(mlp_concat_predictor(x, z, params)['y'])
    assert y_bf16.shape == (samples, tasks, y_dim)
    assert jnp.allclose(y_bf16, y_ref, atol=7.5e-2, rtol=7.5e-2)

    # Shallow config: n_layers=2 (no hidden layers) exercises the mem-bound branch.
    params2 = init_params(kp2, x_dim, z_dim, h_dim, y_dim, n_layers=2)
    with jax.default_matmul_precision("highest"):
        y2_ref = reference_forward(x, z, params2)
    y2 = jax.block_until_ready(
        mlp_concat_predictor(x, z, params2, use_bf16=False)['y'])
    assert y2.shape == (samples, tasks, y_dim)
    assert jnp.allclose(y2, y2_ref, atol=1e-4, rtol=1e-4)

    print("KERNEL_OK")
</pallas_src>

<mosaic_0001>
module attributes {stable_mosaic.version = 11 : i64} {
  func.func @_mlp_kernel(%arg0: i32, %arg1: memref<8x8xf32, #tpu.memory_space<vmem>>, %arg2: memref<8x128xf32, #tpu.memory_space<vmem>>, %arg3: memref<1x128xf32, #tpu.memory_space<vmem>>, %arg4: memref<1x128x128xf32, #tpu.memory_space<vmem>>, %arg5: memref<1x1x128xf32, #tpu.memory_space<vmem>>, %arg6: memref<128x3xf32, #tpu.memory_space<vmem>>, %arg7: memref<1x3xf32, #tpu.memory_space<vmem>>, %arg8: memref<8x3xf32, #tpu.memory_space<vmem>>) attributes {dimension_semantics = [#tpu.dimension_semantics<parallel>], iteration_bounds = array<i64: 2>, scalar_prefetch = 0 : i64, scratch_operands = 0 : i64, tpu.core_type = #tpu.core_type<tc>, window_params = [{pipeline_mode = #tpu.pipeline_mode<double_buffered>, transform_indices = @transform_0, window_bounds = array<i64: 8, 8>}, {pipeline_mode = #tpu.pipeline_mode<synchronous>, transform_indices = @transform_1, window_bounds = array<i64: 8, 128>}, {pipeline_mode = #tpu.pipeline_mode<synchronous>, transform_indices = @transform_2, window_bounds = array<i64: 1, 128>}, {pipeline_mode = #tpu.pipeline_mode<synchronous>, transform_indices = @transform_3, window_bounds = array<i64: 1, 128, 128>}, {pipeline_mode = #tpu.pipeline_mode<synchronous>, transform_indices = @transform_4, window_bounds = array<i64: 1, 1, 128>}, {pipeline_mode = #tpu.pipeline_mode<synchronous>, transform_indices = @transform_5, window_bounds = array<i64: 128, 3>}, {pipeline_mode = #tpu.pipeline_mode<synchronous>, transform_indices = @transform_6, window_bounds = array<i64: 1, 3>}, {pipeline_mode = #tpu.pipeline_mode<double_buffered>, transform_indices = @transform_7, window_bounds = array<i64: 8, 3>}]} {
    %c0 = arith.constant 0 : index
    %c0_0 = arith.constant 0 : index
    %0 = vector.load %arg1[%c0, %c0_0] : memref<8x8xf32, #tpu.memory_space<vmem>>, vector<8x8xf32>
    %c0_1 = arith.constant 0 : index
    %c0_2 = arith.constant 0 : index
    %1 = vector.load %arg2[%c0_1, %c0_2] : memref<8x128xf32, #tpu.memory_space<vmem>>, vector<8x128xf32>
    %cst = arith.constant dense<0.000000e+00> : vector<8x128xf32>
    %2 = tpu.matmul %0, %1, %cst {dimension_numbers = #tpu.dot_dimension_numbers<[1], [0], [0], [1], [0, 0, 1, 1], [], []>} : vector<8x8xf32>, vector<8x128xf32>, vector<8x128xf32> -> vector<8x128xf32>
    %c0_3 = arith.constant 0 : index
    %c0_4 = arith.constant 0 : index
    %3 = vector.load %arg3[%c0_3, %c0_4] : memref<1x128xf32, #tpu.memory_space<vmem>>, vector<1x128xf32>
    %4 = vector.broadcast %3 : vector<1x128xf32> to vector<8x128xf32>
    %5 = arith.addf %2, %4 : vector<8x128xf32>
    %cst_5 = arith.constant 0.000000e+00 : f32
    %6 = vector.broadcast %cst_5 : f32 to vector<8x128xf32>
    %7 = arith.maximumf %5, %6 : vector<8x128xf32>
    %c0_6 = arith.constant 0 : index
    %c0_7 = arith.constant 0 : index
    %c0_8 = arith.constant 0 : index
    %8 = vector.load %arg4[%c0_6, %c0_7, %c0_8] : memref<1x128x128xf32, #tpu.memory_space<vmem>>, vector<1x128x128xf32>
    %9 = vector.shape_cast %8 : vector<1x128x128xf32> to vector<128x128xf32>
    %cst_9 = arith.constant dense<0.000000e+00> : vector<8x128xf32>
    %10 = tpu.matmul %7, %9, %cst_9 {dimension_numbers = #tpu.dot_dimension_numbers<[1], [0], [0], [1], [0, 0, 1, 1], [], []>} : vector<8x128xf32>, vector<128x128xf32>, vector<8x128xf32> -> vector<8x128xf32>
    %c0_10 = arith.constant 0 : index
    %c0_11 = arith.constant 0 : index
    %c0_12 = arith.constant 0 : index
    %11 = vector.load %arg5[%c0_10, %c0_11, %c0_12] : memref<1x1x128xf32, #tpu.memory_space<vmem>>, vector<1x1x128xf32>
    %12 = vector.shape_cast %11 : vector<1x1x128xf32> to vector<1x128xf32>
    %13 = vector.broadcast %12 : vector<1x128xf32> to vector<8x128xf32>
    %14 = arith.addf %10, %13 : vector<8x128xf32>
    %cst_13 = arith.constant 0.000000e+00 : f32
    %15 = vector.broadcast %cst_13 : f32 to vector<8x128xf32>
    %16 = arith.maximumf %14, %15 : vector<8x128xf32>
    %c0_14 = arith.constant 0 : index
    %c0_15 = arith.constant 0 : index
    %17 = vector.load %arg6[%c0_14, %c0_15] : memref<128x3xf32, #tpu.memory_space<vmem>>, vector<128x3xf32>
    %cst_16 = arith.constant dense<0.000000e+00> : vector<8x3xf32>
    %18 = tpu.matmul %16, %17, %cst_16 {dimension_numbers = #tpu.dot_dimension_numbers<[1], [0], [0], [1], [0, 0, 1, 1], [], []>} : vector<8x128xf32>, vector<128x3xf32>, vector<8x3xf32> -> vector<8x3xf32>
    %c0_17 = arith.constant 0 : index
    %c0_18 = arith.constant 0 : index
    %19 = vector.load %arg7[%c0_17, %c0_18] : memref<1x3xf32, #tpu.memory_space<vmem>>, vector<1x3xf32>
    %20 = vector.broadcast %19 : vector<1x3xf32> to vector<8x3xf32>
    %21 = arith.addf %18, %20 : vector<8x3xf32>
    %c0_19 = arith.constant 0 : index
    %c0_20 = arith.constant 0 : index
    %22 = vector.load %arg8[%c0_19, %c0_20] : memref<8x3xf32, #tpu.memory_space<vmem>>, vector<8x3xf32>
    tpu.vector_store %arg8[%c0_19, %c0_20], %21 {strides = array<i32>} : memref<8x3xf32, #tpu.memory_space<vmem>>, vector<8x3xf32>,
    return
  }
  func.func @transform_0(%arg0: i32) -> (i32, i32) {
    %c0_i32 = arith.constant 0 : i32
    %c0_i32_0 = arith.constant 0 : i32
    return %arg0, %c0_i32 : i32, i32
  }
  func.func @transform_1(%arg0: i32) -> (i32, i32) {
    %c0_i32 = arith.constant 0 : i32
    %c0_i32_0 = arith.constant 0 : i32
    %c0_i32_1 = arith.constant 0 : i32
    return %c0_i32, %c0_i32_0 : i32, i32
  }
  func.func @transform_2(%arg0: i32) -> (i32, i32) {
    %c0_i32 = arith.constant 0 : i32
    %c0_i32_0 = arith.constant 0 : i32
    %c0_i32_1 = arith.constant 0 : i32
    return %c0_i32, %c0_i32_0 : i32, i32
  }
  func.func @transform_3(%arg0: i32) -> (i32, i32, i32) {
    %c0_i32 = arith.constant 0 : i32
    %c0_i32_0 = arith.constant 0 : i32
    %c0_i32_1 = arith.constant 0 : i32
    %c0_i32_2 = arith.constant 0 : i32
    return %c0_i32, %c0_i32_0, %c0_i32_1 : i32, i32, i32
  }
  func.func @transform_4(%arg0: i32) -> (i32, i32, i32) {
    %c0_i32 = arith.constant 0 : i32
    %c0_i32_0 = arith.constant 0 : i32
    %c0_i32_1 = arith.constant 0 : i32
    %c0_i32_2 = arith.constant 0 : i32
    return %c0_i32, %c0_i32_0, %c0_i32_1 : i32, i32, i32
  }
  func.func @transform_5(%arg0: i32) -> (i32, i32) {
    %c0_i32 = arith.constant 0 : i32
    %c0_i32_0 = arith.constant 0 : i32
    %c0_i32_1 = arith.constant 0 : i32
    return %c0_i32, %c0_i32_0 : i32, i32
  }
  func.func @transform_6(%arg0: i32) -> (i32, i32) {
    %c0_i32 = arith.constant 0 : i32
    %c0_i32_0 = arith.constant 0 : i32
    %c0_i32_1 = arith.constant 0 : i32
    return %c0_i32, %c0_i32_0 : i32, i32
  }
  func.func @transform_7(%arg0: i32) -> (i32, i32) {
    %c0_i32 = arith.constant 0 : i32
    %c0_i32_0 = arith.constant 0 : i32
    return %arg0, %c0_i32 : i32, i32
  }
}

</mosaic_0001>

<llo_original>
// kernel: tpu_custom_call.1
$region0: #{tpu_custom_call.1}
  #allocation0 [shape = 'u32[]', space=smem, size = 0x4, offset = 0x4, fixed_abs, tag = 'smem constant byte address 0x4 - core index']
  #allocation1 [shape = 'u32[144,128]{1,0:T(1,128)}', space=vmem, size = 0x12000, scoped, tag = 'internal scratch']
  %s0 = inlined_call_operand.hbm [shape: f32[16,8], index: 0, kind: input, shape index: {}]
  %s1 = inlined_call_operand.hbm [shape: f32[8,128], index: 1, kind: input, shape index: {}]
  %s2 = inlined_call_operand.hbm [shape: f32[1,128], index: 2, kind: input, shape index: {}]
  %s3 = inlined_call_operand.hbm [shape: f32[1,128,128], index: 3, kind: input, shape index: {}]
  %s4 = inlined_call_operand.hbm [shape: f32[1,1,128], index: 4, kind: input, shape index: {}]
  %s5 = inlined_call_operand.hbm [shape: f32[128,3], index: 5, kind: input, shape index: {}]
  %s6 = inlined_call_operand.hbm [shape: f32[1,3], index: 6, kind: input, shape index: {}]
  %s7 = inlined_call_operand.hbm [shape: f32[16,3], index: 7, kind: output, shape index: {}]
  %s8 = sld [smem:[#allocation0]]
  $region89: #{tpu_custom_call.1} parent=0
    _
  %s10 = ssub.s32 1, %s8
  %s11 = scalar_select 0, %s10, %s8
  $region1: #{tpu_custom_call.1} parent=0
    #allocation2 [shape = 'u8[8192]{0}', space=vmem, size = 0x2000, scoped, tag = 'input window, operand 0']
    #allocation3 [shape = 's32[2]{0}', space=sflag, size = 0x8, scoped, tag = 'scoped memory for tpu_custom_call.1']
    #allocation4 [shape = 's32[2]{0}', space=sflag, size = 0x8, scoped, tag = 'scoped memory for tpu_custom_call.1']
    #allocation5 [shape = 'u8[4096]{0}', space=vmem, size = 0x1000, scoped, tag = 'input window, operand 1, single buffered']
    #allocation6 [shape = 's32[1]{0}', space=sflag, size = 0x4, scoped, tag = 'scoped memory for tpu_custom_call.1']
    #allocation7 [shape = 'u8[512]{0}', space=vmem, size = 0x400, scoped, tag = 'input window, operand 2, single buffered']
    #allocation8 [shape = 'u8[65536]{0}', space=vmem, size = 0x10000, scoped, tag = 'input window, operand 3, single buffered']
    #allocation9 [shape = 's32[1]{0}', space=sflag, size = 0x4, scoped, tag = 'scoped memory for tpu_custom_call.1']
    #allocation10 [shape = 'u8[512]{0}', space=vmem, size = 0x400, scoped, tag = 'input window, operand 4, single buffered']
    #allocation11 [shape = 'u8[65536]{0}', space=vmem, size = 0x10000, scoped, tag = 'input window, operand 5, single buffered']
    #allocation12 [shape = 's32[1]{0}', space=sflag, size = 0x4, scoped, tag = 'scoped memory for tpu_custom_call.1']
    #allocation13 [shape = 'u8[512]{0}', space=vmem, size = 0x400, scoped, tag = 'input window, operand 6, single buffered']
    #allocation14 [shape = 'u8[8192]{0}', space=vmem, size = 0x2000, scoped, tag = 'output window, operand 0']
    %12 = vsyncpa [#allocation3], 0
    %s13 = scalar_lea.sflag [#allocation3], 1
    %14 = vsyncpa %s13, 0
    %15 = vsyncpa [#allocation6], 0
    %16 = vsyncpa [#allocation9], 0
    %17 = vsyncpa [#allocation12], 0
    %18 = vsyncpa [#allocation4], 0
    %s19 = scalar_lea.sflag [#allocation4], 1
    %20 = vsyncpa %s19, 0
    loop: start=0, step=1, limit=4
    $region2: #{tpu_custom_call.1} parent=1 // loop_pre_header
      _
    $region3: #{tpu_custom_call.1} parent=1 // loop_header
      %s22 = sphi 0, %s26
      %p23 = scmp.ge.s32.totalorder %s22, 4
      %s32 = sphi 0, %s34
      %s35 = sphi 0, %s32
      %s36 = sphi 0, %s35
      %s52 = sphi 0, %s36
      %s56 = sphi 0, %s56
      %s58 = sphi 0, %s56
      %s59 = sphi 0, %s58
      %s73 = sphi 0, %s59
      %s77 = sphi 0, %s77
      %s79 = sphi 0, %s77
      %s80 = sphi 0, %s79
      %s94 = sphi 0, %s80
      %s98 = sphi 0, %s98
      %s100 = sphi 0, %s98
      %s101 = sphi 0, %s100
      %s115 = sphi 0, %s101
      %s119 = sphi 0, %s119
      %s121 = sphi 0, %s119
      %s122 = sphi 0, %s121
      %s136 = sphi 0, %s122
      %s140 = sphi 0, %s140
      %s142 = sphi 0, %s140
      %s143 = sphi 0, %s142
      %s157 = sphi 0, %s143
      %s161 = sphi 0, %s161
      %s163 = sphi 0, %s161
      %s164 = sphi 0, %s163
      %s178 = sphi 0, %s164
      %s184 = sphi 0, %s186
      %s187 = sphi 0, %s184
      %s188 = sphi 0, %s187
      %s204 = sphi 0, %s188
    $region4: #{tpu_custom_call.1} parent=1 // loop_header_branch
      %25 = sbr.rel (%p23) target = $region8
    $region5: #{tpu_custom_call.1} parent=1 // loop_body
      %s27 = ssub.s32 %s22, 1
      %s28 = ssub.s32 %s22, 2
      %s29 = sadd.s32 %s22, 1
      %s30 = ssub.s32 %s22, %s29
      %p31 = scmp.eq.s32.totalorder %s30, 0
      %s33 = sadd.s32 %s32, 1
      %s34 = scalar_select %p31, %s32, %s33
      %p37 = pneg %p31
      %p38 = scmp.eq.s32.totalorder %s22, 1
      %p39 = por %p37, %p38
      %p40 = scmp.ne.s32.totalorder %s32, %s35
      %p41 = scmp.eq.s32.totalorder %s22, 0
      %p42 = por %p40, %p41
      %p43 = scmp.ne.s32.totalorder %s32, %s35
      %p44 = scmp.eq.s32.totalorder %s27, 1
      %p45 = por %p43, %p44
      %p46 = scmp.ne.s32.totalorder %s35, %s36
      %p47 = scmp.eq.s32.totalorder %s27, 0
      %p48 = por %p46, %p47
      %p49 = scmp.ne.s32.totalorder %s35, %s36
      %p50 = scmp.eq.s32.totalorder %s28, 1
      %p51 = por %p49, %p50
      %p53 = scmp.ne.s32.totalorder %s36, %s52
      %p54 = scmp.eq.s32.totalorder %s28, 0
      %p55 = por %p53, %p54
      %s57 = sadd.s32 %s56, 1
      %p60 = scmp.eq.s32.totalorder %s22, 1
      %p61 = scmp.ne.s32.totalorder %s56, %s58
      %p62 = scmp.eq.s32.totalorder %s22, 0
      %p63 = por %p61, %p62
      %p64 = scmp.ne.s32.totalorder %s56, %s58
      %p65 = scmp.eq.s32.totalorder %s27, 1
      %p66 = por %p64, %p65
      %p67 = scmp.ne.s32.totalorder %s58, %s59
      %p68 = scmp.eq.s32.totalorder %s27, 0
      %p69 = por %p67, %p68
      %p70 = scmp.ne.s32.totalorder %s58, %s59
      %p71 = scmp.eq.s32.totalorder %s28, 1
      %p72 = por %p70, %p71
      %p74 = scmp.ne.s32.totalorder %s59, %s73
      %p75 = scmp.eq.s32.totalorder %s28, 0
      %p76 = por %p74, %p75
      %s78 = sadd.s32 %s77, 1
      %p81 = scmp.eq.s32.totalorder %s22, 1
      %p82 = scmp.ne.s32.totalorder %s77, %s79
      %p83 = scmp.eq.s32.totalorder %s22, 0
      %p84 = por %p82, %p83
      %p85 = scmp.ne.s32.totalorder %s77, %s79
      %p86 = scmp.eq.s32.totalorder %s27, 1
      %p87 = por %p85, %p86
      %p88 = scmp.ne.s32.totalorder %s79, %s80
      %p89 = scmp.eq.s32.totalorder %s27, 0
      %p90 = por %p88, %p89
      %p91 = scmp.ne.s32.totalorder %s79, %s80
      %p92 = scmp.eq.s32.totalorder %s28, 1
      %p93 = por %p91, %p92
      %p95 = scmp.ne.s32.totalorder %s80, %s94
      %p96 = scmp.eq.s32.totalorder %s28, 0
      %p97 = por %p95, %p96
      %s99 = sadd.s32 %s98, 1
      %p102 = scmp.eq.s32.totalorder %s22, 1
      %p103 = scmp.ne.s32.totalorder %s98, %s100
      %p104 = scmp.eq.s32.totalorder %s22, 0
      %p105 = por %p103, %p104
      %p106 = scmp.ne.s32.totalorder %s98, %s100
      %p107 = scmp.eq.s32.totalorder %s27, 1
      %p108 = por %p106, %p107
      %p109 = scmp.ne.s32.totalorder %s100, %s101
      %p110 = scmp.eq.s32.totalorder %s27, 0
      %p111 = por %p109, %p110
      %p112 = scmp.ne.s32.totalorder %s100, %s101
      %p113 = scmp.eq.s32.totalorder %s28, 1
      %p114 = por %p112, %p113
      %p116 = scmp.ne.s32.totalorder %s101, %s115
      %p117 = scmp.eq.s32.totalorder %s28, 0
      %p118 = por %p116, %p117
      %s120 = sadd.s32 %s119, 1
      %p123 = scmp.eq.s32.totalorder %s22, 1
      %p124 = scmp.ne.s32.totalorder %s119, %s121
      %p125 = scmp.eq.s32.totalorder %s22, 0
      %p126 = por %p124, %p125
      %p127 = scmp.ne.s32.totalorder %s119, %s121
      %p128 = scmp.eq.s32.totalorder %s27, 1
      %p129 = por %p127, %p128
      %p130 = scmp.ne.s32.totalorder %s121, %s122
      %p131 = scmp.eq.s32.totalorder %s27, 0
      %p132 = por %p130, %p131
      %p133 = scmp.ne.s32.totalorder %s121, %s122
      %p134 = scmp.eq.s32.totalorder %s28, 1
      %p135 = por %p133, %p134
      %p137 = scmp.ne.s32.totalorder %s122, %s136
      %p138 = scmp.eq.s32.totalorder %s28, 0
      %p139 = por %p137, %p138
      %s141 = sadd.s32 %s140, 1
      %p144 = scmp.eq.s32.totalorder %s22, 1
      %p145 = scmp.ne.s32.totalorder %s140, %s142
      %p146 = scmp.eq.s32.totalorder %s22, 0
      %p147 = por %p145, %p146
      %p148 = scmp.ne.s32.totalorder %s140, %s142
      %p149 = scmp.eq.s32.totalorder %s27, 1
      %p150 = por %p148, %p149
      %p151 = scmp.ne.s32.totalorder %s142, %s143
      %p152 = scmp.eq.s32.totalorder %s27, 0
      %p153 = por %p151, %p152
      %p154 = scmp.ne.s32.totalorder %s142, %s143
      %p155 = scmp.eq.s32.totalorder %s28, 1
      %p156 = por %p154, %p155
      %p158 = scmp.ne.s32.totalorder %s143, %s157
      %p159 = scmp.eq.s32.totalorder %s28, 0
      %p160 = por %p158, %p159
      %s162 = sadd.s32 %s161, 1
      %p165 = scmp.eq.s32.totalorder %s22, 1
      %p166 = scmp.ne.s32.totalorder %s161, %s163
      %p167 = scmp.eq.s32.totalorder %s22, 0
      %p168 = por %p166, %p167
      %p169 = scmp.ne.s32.totalorder %s161, %s163
      %p170 = scmp.eq.s32.totalorder %s27, 1
      %p171 = por %p169, %p170
      %p172 = scmp.ne.s32.totalorder %s163, %s164
      %p173 = scmp.eq.s32.totalorder %s27, 0
      %p174 = por %p172, %p173
      %p175 = scmp.ne.s32.totalorder %s163, %s164
      %p176 = scmp.eq.s32.totalorder %s28, 1
      %p177 = por %p175, %p176
      %p179 = scmp.ne.s32.totalorder %s164, %s178
      %p180 = scmp.eq.s32.totalorder %s28, 0
      %p181 = por %p179, %p180
      %s182 = ssub.s32 %s22, %s29
      %p183 = scmp.eq.s32.totalorder %s182, 0
      %s185 = sadd.s32 %s184, 1
      %s186 = scalar_select %p183, %s184, %s185
      %p189 = pneg %p183
      %p190 = scmp.eq.s32.totalorder %s22, 1
      %p191 = por %p189, %p190
      %p192 = scmp.ne.s32.totalorder %s184, %s187
      %p193 = scmp.eq.s32.totalorder %s22, 0
      %p194 = por %p192, %p193
      %p195 = scmp.ne.s32.totalorder %s184, %s187
      %p196 = scmp.eq.s32.totalorder %s27, 1
      %p197 = por %p195, %p196
      %p198 = scmp.ne.s32.totalorder %s187, %s188
      %p199 = scmp.eq.s32.totalorder %s27, 0
      %p200 = por %p198, %p199
      %p201 = scmp.ne.s32.totalorder %s187, %s188
      %p202 = scmp.eq.s32.totalorder %s28, 1
      %p203 = por %p201, %p202
      %p205 = scmp.ne.s32.totalorder %s188, %s204
      %p206 = scmp.eq.s32.totalorder %s28, 0
      %p207 = por %p205, %p206
      %p208 = scmp.le.s32.totalorder 1, %s22
      %p209 = scmp.lt.s32.totalorder %s22, 3
      %p210 = pnand %p208, %p209
      %p211 = pneg %p210
      // Predicated region
      $region9: #{tpu_custom_call.1} parent=5 // pred_check
        _
      $region10: #{tpu_custom_call.1} parent=5 // pred_check_branch
        %213 = sbr.rel (%p210) target = $region12
      $region11: #{tpu_custom_call.1} parent=5 // pred_region
        %s214 = ssub.s32 %s22, 1
        // Predicated region
        $region13: #{tpu_custom_call.1} parent=11 // pred_check
          %p215 = pneg %p69
        $region14: #{tpu_custom_call.1} parent=11 // pred_check_branch
          %217 = sbr.rel (%p215) target = $region16
        $region15: #{tpu_custom_call.1} parent=11 // pred_region
          %s219 = ssub.s32 128, 128
          %220 = vsyncadd [#allocation6], %s219
          %s222 = sshll.u32 [#allocation5], 4
          %s223 = int_to_ptr.vmem [resolvable:$true] %s222
          %225 = dma.hbm_to_vmem [thread:$0]  %s1, 128, %s223, [#allocation6]
        $region16: #{tpu_custom_call.1} parent=11 // pred_fallthru
          _
        // Predicated region
        $region17: #{tpu_custom_call.1} parent=11 // pred_check
          %p226 = pneg %p90
        $region18: #{tpu_custom_call.1} parent=11 // pred_check_branch
          %228 = sbr.rel (%p226) target = $region20
        $region19: #{tpu_custom_call.1} parent=11 // pred_region
          %s230 = ssub.s32 16, 16
          %231 = vsyncadd [#allocation6], %s230
          %s233 = sshll.u32 [#allocation7], 4
          %s234 = int_to_ptr.vmem [resolvable:$true] %s233
          %236 = dma.hbm_to_vmem [thread:$0]  %s2, 16, %s234, [#allocation6]
        $region20: #{tpu_custom_call.1} parent=11 // pred_fallthru
          _
        // Predicated region
        $region21: #{tpu_custom_call.1} parent=11 // pred_check
          %p237 = pneg %p111
        $region22: #{tpu_custom_call.1} parent=11 // pred_check_branch
          %239 = sbr.rel (%p237) target = $region24
        $region23: #{tpu_custom_call.1} parent=11 // pred_region
          %s241 = ssub.s32 2048, 2048
          %242 = vsyncadd [#allocation9], %s241
          %s243 = sshll.u32 [#allocation8], 4
          %s244 = int_to_ptr.vmem [resolvable:$true] %s243
          %249 = dma.hbm_to_vmem [thread:$0]  %s3, 2048, %s244, [#allocation9], 128, 128, 8
        $region24: #{tpu_custom_call.1} parent=11 // pred_fallthru
          _
        // Predicated region
        $region25: #{tpu_custom_call.1} parent=11 // pred_check
          %p250 = pneg %p132
        $region26: #{tpu_custom_call.1} parent=11 // pred_check_branch
          %252 = sbr.rel (%p250) target = $region28
        $region27: #{tpu_custom_call.1} parent=11 // pred_region
          %s254 = ssub.s32 16, 16
          %255 = vsyncadd [#allocation9], %s254
          %s257 = sshll.u32 [#allocation10], 4
          %s258 = int_to_ptr.vmem [resolvable:$true] %s257
          %260 = dma.hbm_to_vmem [thread:$0]  %s4, 16, %s258, [#allocation9]
        $region28: #{tpu_custom_call.1} parent=11 // pred_fallthru
          _
        // Predicated region
        $region29: #{tpu_custom_call.1} parent=11 // pred_check
          %p261 = pneg %p153
        $region30: #{tpu_custom_call.1} parent=11 // pred_check_branch
          %263 = sbr.rel (%p261) target = $region32
        $region31: #{tpu_custom_call.1} parent=11 // pred_region
          %s265 = ssub.s32 2048, 2048
          %266 = vsyncadd [#allocation12], %s265
          %s267 = sshll.u32 [#allocation11], 4
          %s268 = int_to_ptr.vmem [resolvable:$true] %s267
          %273 = dma.hbm_to_vmem [thread:$0]  %s5, 2048, %s268, [#allocation12], 128, 128, 8
        $region32: #{tpu_custom_call.1} parent=11 // pred_fallthru
          _
        // Predicated region
        $region33: #{tpu_custom_call.1} parent=11 // pred_check
          %p274 = pneg %p174
        $region34: #{tpu_custom_call.1} parent=11 // pred_check_branch
          %276 = sbr.rel (%p274) target = $region36
        $region35: #{tpu_custom_call.1} parent=11 // pred_region
          %s278 = ssub.s32 16, 16
          %279 = vsyncadd [#allocation12], %s278
          %s281 = sshll.u32 [#allocation13], 4
          %s282 = int_to_ptr.vmem [resolvable:$true] %s281
          %284 = dma.hbm_to_vmem [thread:$0]  %s6, 16, %s282, [#allocation12]
        $region36: #{tpu_custom_call.1} parent=11 // pred_fallthru
          _
      $region12: #{tpu_custom_call.1} parent=5 // pred_fallthru
        _
      %p285 = scmp.lt.s32.totalorder %s22, 2
      // Predicated region
      $region37: #{tpu_custom_call.1} parent=5 // pred_check
        %p286 = pneg %p285
      $region38: #{tpu_custom_call.1} parent=5 // pred_check_branch
        %288 = sbr.rel (%p286) target = $region40
      $region39: #{tpu_custom_call.1} parent=5 // pred_region
        // Predicated region
        $region41: #{tpu_custom_call.1} parent=39 // pred_check
          %p289 = pneg %p42
        $region42: #{tpu_custom_call.1} parent=39 // pred_check_branch
          %291 = sbr.rel (%p289) target = $region44
        $region43: #{tpu_custom_call.1} parent=39 // pred_region
          %s292 = sand.u32 %s32, 1
          %s293 = scalar_lea.sflag [#allocation3], %s292
          %s294 = sand.u32 %s32, 1
          %s295 = smul.addr %s294, 8
          %s296 = scalar_lea.vmem [#allocation2], %s295
          %s298 = ssub.s32 128, 128
          %299 = vsyncadd %s293, %s298
          %s300 = smul.addr %s22, 128
          %s301 = scalar_lea.hbm %s0, %s300
          %s303 = sshll.u32 %s296, 4
          %s304 = int_to_ptr.vmem [resolvable:$true] %s303
          %306 = dma.hbm_to_vmem [thread:$0]  %s301, 128, %s304, %s293
        $region44: #{tpu_custom_call.1} parent=39 // pred_fallthru
          _
      $region40: #{tpu_custom_call.1} parent=5 // pred_fallthru
        _
      %p307 = scmp.le.s32.totalorder 1, %s22
      %p308 = scmp.lt.s32.totalorder %s22, 3
      %p309 = pnand %p307, %p308
      %p310 = pneg %p309
      // Predicated region
      $region45: #{tpu_custom_call.1} parent=5 // pred_check
        _
      $region46: #{tpu_custom_call.1} parent=5 // pred_check_branch
        %312 = sbr.rel (%p309) target = $region48
      $region47: #{tpu_custom_call.1} parent=5 // pred_region
        %s313 = ssub.s32 %s22, 1
        %s314 = sand.u32 %s35, 1
        %s315 = scalar_lea.sflag [#allocation3], %s314
        %s316 = sand.u32 %s35, 1
        %s317 = smul.addr %s316, 8
        %s318 = scalar_lea.vmem [#allocation2], %s317
        // Predicated region
        $region49: #{tpu_custom_call.1} parent=47 // pred_check
          %p319 = pneg %p48
        $region50: #{tpu_custom_call.1} parent=47 // pred_check_branch
          %321 = sbr.rel (%p319) target = $region52
        $region51: #{tpu_custom_call.1} parent=47 // pred_region
          %322 = dma.done %s315, 128
        $region52: #{tpu_custom_call.1} parent=47 // pred_fallthru
          _
        // Predicated region
        $region53: #{tpu_custom_call.1} parent=47 // pred_check
          %p323 = pneg %p69
        $region54: #{tpu_custom_call.1} parent=47 // pred_check_branch
          %325 = sbr.rel (%p323) target = $region56
        $region55: #{tpu_custom_call.1} parent=47 // pred_region
          %326 = dma.done [#allocation6], 128
        $region56: #{tpu_custom_call.1} parent=47 // pred_fallthru
          _
        // Predicated region
        $region57: #{tpu_custom_call.1} parent=47 // pred_check
          %p327 = pneg %p90
        $region58: #{tpu_custom_call.1} parent=47 // pred_check_branch
          %329 = sbr.rel (%p327) target = $region60
        $region59: #{tpu_custom_call.1} parent=47 // pred_region
          %330 = dma.done [#allocation6], 16
        $region60: #{tpu_custom_call.1} parent=47 // pred_fallthru
          _
        // Predicated region
        $region61: #{tpu_custom_call.1} parent=47 // pred_check
          %p331 = pneg %p111
        $region62: #{tpu_custom_call.1} parent=47 // pred_check_branch
          %333 = sbr.rel (%p331) target = $region64
        $region63: #{tpu_custom_call.1} parent=47 // pred_region
          %334 = dma.done [#allocation9], 2048
        $region64: #{tpu_custom_call.1} parent=47 // pred_fallthru
          _
        // Predicated region
        $region65: #{tpu_custom_call.1} parent=47 // pred_check
          %p335 = pneg %p132
        $region66: #{tpu_custom_call.1} parent=47 // pred_check_branch
          %337 = sbr.rel (%p335) target = $region68
        $region67: #{tpu_custom_call.1} parent=47 // pred_region
          %338 = dma.done [#allocation9], 16
        $region68: #{tpu_custom_call.1} parent=47 // pred_fallthru
          _
        // Predicated region
        $region69: #{tpu_custom_call.1} parent=47 // pred_check
          %p339 = pneg %p153
        $region70: #{tpu_custom_call.1} parent=47 // pred_check_branch
          %341 = sbr.rel (%p339) target = $region72
        $region71: #{tpu_custom_call.1} parent=47 // pred_region
          %342 = dma.done [#allocation12], 2048
        $region72: #{tpu_custom_call.1} parent=47 // pred_fallthru
          _
        // Predicated region
        $region73: #{tpu_custom_call.1} parent=47 // pred_check
          %p343 = pneg %p174
        $region74: #{tpu_custom_call.1} parent=47 // pred_check_branch
          %345 = sbr.rel (%p343) target = $region76
        $region75: #{tpu_custom_call.1} parent=47 // pred_region
          %346 = dma.done [#allocation12], 16
        $region76: #{tpu_custom_call.1} parent=47 // pred_fallthru
          _
        %s347 = sand.u32 %s35, 1
        %s348 = scalar_lea.sflag [#allocation3], %s347
        %s349 = sand.u32 %s35, 1
        %s350 = smul.addr %s349, 8
        %s351 = scalar_lea.vmem [#allocation2], %s350
        %p352 = pneg %p48
        %p353 = pneg %p45
        %p354 = pneg %p69
        %p355 = pneg %p66
        %p356 = pneg %p90
        %p357 = pneg %p87
        %p358 = pneg %p111
        %p359 = pneg %p108
        %p360 = pneg %p132
        %p361 = pneg %p129
        %p362 = pneg %p153
        %p363 = pneg %p150
        %p364 = pneg %p174
        %p365 = pneg %p171
        %p366 = pneg %p200
        %p367 = pneg %p197
        %s368 = sand.u32 %s187, 1
        %s369 = scalar_lea.sflag [#allocation4], %s368
        %s370 = sand.u32 %s187, 1
        %s371 = smul.addr %s370, 8
        %s372 = scalar_lea.vmem [#allocation14], %s371
        %v373 = vld [vmem:[%s318] sm:$0xff]
        %v374 = vld [vmem:[#allocation5] sm:$0xff]
        %v375 = vld [vmem:[#allocation7] sm:$0x1]
        %v377 = vlaneseq
        %v378 = vshrl.u32 %v377, 7
        %v379 = vsub.s32 0, %v378
        %v380 = vrot.slane %v375, %v379
        %vm382 = vcmask 64512
        %v384 = vsel %vm382, %v373, 0
        %386 = vmatprep.subr.mxu0 0.0
        %387 = vmatpush1.msra.mxu0 %v374
        %388 = vmatprep.subr.mxu0 0.0
        %389 = vmatpush1.msra.mxu0 0.0
        %390 = vmatprep.subr.mxu0 0.0
        %391 = vmatpush1.msra.mxu0 0.0
        %392 = vmatprep.subr.mxu0 0.0
        %393 = vmatpush1.msra.mxu0 0.0
        %394 = vmatprep.subr.mxu0 0.0
        %395 = vmatpush1.msra.mxu0 0.0
        %396 = vmatprep.subr.mxu0 0.0
        %397 = vmatpush1.msra.mxu0 0.0
        %398 = vmatprep.subr.mxu0 0.0
        %399 = vmatpush1.msra.mxu0 0.0
        %400 = vmatprep.subr.mxu0 0.0
        %401 = vmatpush1.msra.mxu0 0.0
        %402 = vmatprep.subr.mxu0 0.0
        %403 = vmatpush1.msra.mxu0 0.0
        %404 = vmatprep.subr.mxu0 0.0
        %405 = vmatpush1.msra.mxu0 0.0
        %406 = vmatprep.subr.mxu0 0.0
        %407 = vmatpush1.msra.mxu0 0.0
        %408 = vmatprep.subr.mxu0 0.0
        %409 = vmatpush1.msra.mxu0 0.0
        %410 = vmatprep.subr.mxu0 0.0
        %411 = vmatpush1.msra.mxu0 0.0
        %412 = vmatprep.subr.mxu0 0.0
        %413 = vmatpush1.msra.mxu0 0.0
        %414 = vmatprep.subr.mxu0 0.0
        %415 = vmatpush1.msra.mxu0 0.0
        %416 = vmatprep.subr.mxu0 0.0
        %417 = vmatpush1.msra.mxu0 0.0
        %418 = vmatprep.subr.mxu0 0.0
        %419 = vmatpush1.msra.mxu0 0.0
        %420 = vmatprep.subr.mxu0 0.0
        %421 = vmatpush1.msra.mxu0 0.0
        %422 = vmatprep.subr.mxu0 0.0
        %423 = vmatpush1.msra.mxu0 0.0
        %424 = vmatprep.subr.mxu0 0.0
        %425 = vmatpush1.msra.mxu0 0.0
        %426 = vmatprep.subr.mxu0 0.0
        %427 = vmatpush1.msra.mxu0 0.0
        %428 = vmatprep.subr.mxu0 0.0
        %429 = vmatpush1.msra.mxu0 0.0
        %430 = vmatprep.subr.mxu0 0.0
        %431 = vmatpush1.msra.mxu0 0.0
        %432 = vmatprep.subr.mxu0 0.0
        %433 = vmatpush1.msra.mxu0 0.0
        %434 = vmatprep.subr.mxu0 0.0
        %435 = vmatpush1.msra.mxu0 0.0
        %436 = vmatprep.subr.mxu0 0.0
        %437 = vmatpush1.msra.mxu0 0.0
        %438 = vmatprep.subr.mxu0 0.0
        %439 = vmatpush1.msra.mxu0 0.0
        %440 = vmatprep.subr.mxu0 0.0
        %441 = vmatpush1.msra.mxu0 0.0
        %442 = vmatprep.subr.mxu0 0.0
        %443 = vmatpush1.msra.mxu0 0.0
        %444 = vmatprep.subr.mxu0 0.0
        %445 = vmatpush1.msra.mxu0 0.0
        %446 = vmatprep.subr.mxu0 0.0
        %447 = vmatpush1.msra.mxu0 0.0
        %448 = vmatprep.subr.mxu0 0.0
        %449 = vmatpush1.msra.mxu0 0.0
        %450 = vmatprep.mubr.f32.mxu0 0.0
        %451 = vmatmul.mubr.f32.gmra.mrb[0].mxu0 %v384
        %v452 = vpop.f32.mrb[0].mxu0
        %v453 = vadd.f32 %v380, %v452
        %v454 = vpop.f32.mrb[0].mxu0
        %455 = vdwg.mxu0
        %v456 = vmax.f32 %v453, 0.0
        %v457 = vld [vmem:[#allocation8] sm:$0xff]
        %v458 = vld [vmem:[#allocation8 + $0x8] sm:$0xff]
        %v459 = vld [vmem:[#allocation8 + $0x10] sm:$0xff]
        %v460 = vld [vmem:[#allocation8 + $0x18] sm:$0xff]
        %v461 = vld [vmem:[#allocation8 + $0x20] sm:$0xff]
        %v462 = vld [vmem:[#allocation8 + $0x28] sm:$0xff]
        %v463 = vld [vmem:[#allocation8 + $0x30] sm:$0xff]
        %v464 = vld [vmem:[#allocation8 + $0x38] sm:$0xff]
        %v465 = vld [vmem:[#allocation8 + $0x40] sm:$0xff]
        %v466 = vld [vmem:[#allocation8 + $0x48] sm:$0xff]
        %v467 = vld [vmem:[#allocation8 + $0x50] sm:$0xff]
        %v468 = vld [vmem:[#allocation8 + $0x58] sm:$0xff]
        %v469 = vld [vmem:[#allocation8 + $0x60] sm:$0xff]
        %v470 = vld [vmem:[#allocation8 + $0x68] sm:$0xff]
        %v471 = vld [vmem:[#allocation8 + $0x70] sm:$0xff]
        %v472 = vld [vmem:[#allocation8 + $0x78] sm:$0xff]
        %v473 = vld [vmem:[#allocation10] sm:$0x1]
        %v475 = vlaneseq
        %v476 = vshrl.u32 %v475, 7
        %v477 = vsub.s32 0, %v476
        %v478 = vrot.slane %v473, %v477
        %480 = vmatprep.subr.mxu0 0.0
        %481 = vmatpush1.msra.mxu0 %v457
        %482 = vmatprep.subr.mxu0 0.0
        %483 = vmatpush1.msra.mxu0 %v458
        %484 = vmatprep.subr.mxu0 0.0
        %485 = vmatpush1.msra.mxu0 %v459
        %486 = vmatprep.subr.mxu0 0.0
        %487 = vmatpush1.msra.mxu0 %v460
        %488 = vmatprep.subr.mxu0 0.0
        %489 = vmatpush1.msra.mxu0 %v461
        %490 = vmatprep.subr.mxu0 0.0
        %491 = vmatpush1.msra.mxu0 %v462
        %492 = vmatprep.subr.mxu0 0.0
        %493 = vmatpush1.msra.mxu0 %v463
        %494 = vmatprep.subr.mxu0 0.0
        %495 = vmatpush1.msra.mxu0 %v464
        %496 = vmatprep.subr.mxu0 0.0
        %497 = vmatpush1.msra.mxu0 %v465
        %498 = vmatprep.subr.mxu0 0.0
        %499 = vmatpush1.msra.mxu0 %v466
        %500 = vmatprep.subr.mxu0 0.0
        %501 = vmatpush1.msra.mxu0 %v467
        %502 = vmatprep.subr.mxu0 0.0
        %503 = vmatpush1.msra.mxu0 %v468
        %504 = vmatprep.subr.mxu0 0.0
        %505 = vmatpush1.msra.mxu0 %v469
        %506 = vmatprep.subr.mxu0 0.0
        %507 = vmatpush1.msra.mxu0 %v470
        %508 = vmatprep.subr.mxu0 0.0
        %509 = vmatpush1.msra.mxu0 %v471
        %510 = vmatprep.subr.mxu0 0.0
        %511 = vmatpush1.msra.mxu0 %v472
        %512 = vmatprep.subr.mxu0 0.0
        %513 = vmatpush1.msra.mxu0 0.0
        %514 = vmatprep.subr.mxu0 0.0
        %515 = vmatpush1.msra.mxu0 0.0
        %516 = vmatprep.subr.mxu0 0.0
        %517 = vmatpush1.msra.mxu0 0.0
        %518 = vmatprep.subr.mxu0 0.0
        %519 = vmatpush1.msra.mxu0 0.0
        %520 = vmatprep.subr.mxu0 0.0
        %521 = vmatpush1.msra.mxu0 0.0
        %522 = vmatprep.subr.mxu0 0.0
        %523 = vmatpush1.msra.mxu0 0.0
        %524 = vmatprep.subr.mxu0 0.0
        %525 = vmatpush1.msra.mxu0 0.0
        %526 = vmatprep.subr.mxu0 0.0
        %527 = vmatpush1.msra.mxu0 0.0
        %528 = vmatprep.subr.mxu0 0.0
        %529 = vmatpush1.msra.mxu0 0.0
        %530 = vmatprep.subr.mxu0 0.0
        %531 = vmatpush1.msra.mxu0 0.0
        %532 = vmatprep.subr.mxu0 0.0
        %533 = vmatpush1.msra.mxu0 0.0
        %534 = vmatprep.subr.mxu0 0.0
        %535 = vmatpush1.msra.mxu0 0.0
        %536 = vmatprep.subr.mxu0 0.0
        %537 = vmatpush1.msra.mxu0 0.0
        %538 = vmatprep.subr.mxu0 0.0
        %539 = vmatpush1.msra.mxu0 0.0
        %540 = vmatprep.subr.mxu0 0.0
        %541 = vmatpush1.msra.mxu0 0.0
        %542 = vmatprep.subr.mxu0 0.0
        %543 = vmatpush1.msra.mxu0 0.0
        %544 = vmatprep.mubr.f32.mxu0 0.0
        %545 = vmatmul.mubr.f32.gmra.mrb[0].mxu0 %v456
        %v546 = vpop.f32.mrb[0].mxu0
        %v547 = vadd.f32 %v478, %v546
        %v548 = vpop.f32.mrb[0].mxu0
        %549 = vdwg.mxu0
        %v550 = vmax.f32 %v547, 0.0
        %v551 = vld [vmem:[#allocation11] sm:$0xff]
        %v552 = vld [vmem:[#allocation11 + $0x8] sm:$0xff]
        %v553 = vld [vmem:[#allocation11 + $0x10] sm:$0xff]
        %v554 = vld [vmem:[#allocation11 + $0x18] sm:$0xff]
        %v555 = vld [vmem:[#allocation11 + $0x20] sm:$0xff]
        %v556 = vld [vmem:[#allocation11 + $0x28] sm:$0xff]
        %v557 = vld [vmem:[#allocation11 + $0x30] sm:$0xff]
        %v558 = vld [vmem:[#allocation11 + $0x38] sm:$0xff]
        %v559 = vld [vmem:[#allocation11 + $0x40] sm:$0xff]
        %v560 = vld [vmem:[#allocation11 + $0x48] sm:$0xff]
        %v561 = vld [vmem:[#allocation11 + $0x50] sm:$0xff]
        %v562 = vld [vmem:[#allocation11 + $0x58] sm:$0xff]
        %v563 = vld [vmem:[#allocation11 + $0x60] sm:$0xff]
        %v564 = vld [vmem:[#allocation11 + $0x68] sm:$0xff]
        %v565 = vld [vmem:[#allocation11 + $0x70] sm:$0xff]
        %v566 = vld [vmem:[#allocation11 + $0x78] sm:$0xff]
        %v567 = vld [vmem:[#allocation13] sm:$0x1]
        %v569 = vlaneseq
        %v570 = vshrl.u32 %v569, 7
        %v571 = vsub.s32 0, %v570
        %v572 = vrot.slane %v567, %v571
        %574 = vmatprep.subr.mxu0 0.0
        %575 = vmatpush1.msra.mxu0 %v551
        %576 = vmatprep.subr.mxu0 0.0
        %577 = vmatpush1.msra.mxu0 %v552
        %578 = vmatprep.subr.mxu0 0.0
        %579 = vmatpush1.msra.mxu0 %v553
        %580 = vmatprep.subr.mxu0 0.0
        %581 = vmatpush1.msra.mxu0 %v554
        %582 = vmatprep.subr.mxu0 0.0
        %583 = vmatpush1.msra.mxu0 %v555
        %584 = vmatprep.subr.mxu0 0.0
        %585 = vmatpush1.msra.mxu0 %v556
        %586 = vmatprep.subr.mxu0 0.0
        %587 = vmatpush1.msra.mxu0 %v557
        %588 = vmatprep.subr.mxu0 0.0
        %589 = vmatpush1.msra.mxu0 %v558
        %590 = vmatprep.subr.mxu0 0.0
        %591 = vmatpush1.msra.mxu0 %v559
        %592 = vmatprep.subr.mxu0 0.0
        %593 = vmatpush1.msra.mxu0 %v560
        %594 = vmatprep.subr.mxu0 0.0
        %595 = vmatpush1.msra.mxu0 %v561
        %596 = vmatprep.subr.mxu0 0.0
        %597 = vmatpush1.msra.mxu0 %v562
        %598 = vmatprep.subr.mxu0 0.0
        %599 = vmatpush1.msra.mxu0 %v563
        %600 = vmatprep.subr.mxu0 0.0
        %601 = vmatpush1.msra.mxu0 %v564
        %602 = vmatprep.subr.mxu0 0.0
        %603 = vmatpush1.msra.mxu0 %v565
        %604 = vmatprep.subr.mxu0 0.0
        %605 = vmatpush1.msra.mxu0 %v566
        %606 = vmatprep.subr.mxu0 0.0
        %607 = vmatpush1.msra.mxu0 0.0
        %608 = vmatprep.subr.mxu0 0.0
        %609 = vmatpush1.msra.mxu0 0.0
        %610 = vmatprep.subr.mxu0 0.0
        %611 = vmatpush1.msra.mxu0 0.0
        %612 = vmatprep.subr.mxu0 0.0
        %613 = vmatpush1.msra.mxu0 0.0
        %614 = vmatprep.subr.mxu0 0.0
        %615 = vmatpush1.msra.mxu0 0.0
        %616 = vmatprep.subr.mxu0 0.0
        %617 = vmatpush1.msra.mxu0 0.0
        %618 = vmatprep.subr.mxu0 0.0
        %619 = vmatpush1.msra.mxu0 0.0
        %620 = vmatprep.subr.mxu0 0.0
        %621 = vmatpush1.msra.mxu0 0.0
        %622 = vmatprep.subr.mxu0 0.0
        %623 = vmatpush1.msra.mxu0 0.0
        %624 = vmatprep.subr.mxu0 0.0
        %625 = vmatpush1.msra.mxu0 0.0
        %626 = vmatprep.subr.mxu0 0.0
        %627 = vmatpush1.msra.mxu0 0.0
        %628 = vmatprep.subr.mxu0 0.0
        %629 = vmatpush1.msra.mxu0 0.0
        %630 = vmatprep.subr.mxu0 0.0
        %631 = vmatpush1.msra.mxu0 0.0
        %632 = vmatprep.subr.mxu0 0.0
        %633 = vmatpush1.msra.mxu0 0.0
        %634 = vmatprep.subr.mxu0 0.0
        %635 = vmatpush1.msra.mxu0 0.0
        %636 = vmatprep.subr.mxu0 0.0
        %637 = vmatpush1.msra.mxu0 0.0
        %638 = vmatprep.mubr.f32.mxu0 0.0
        %639 = vmatmul.mubr.f32.gmra.mrb[0].mxu0 %v550
        %v640 = vpop.f32.mrb[0].mxu0
        %v641 = vadd.f32 %v572, %v640
        %v642 = vpop.f32.mrb[0].mxu0
        %643 = vdwg.mxu0
        %vm644 = vcmask 23552
        %645 = vst.msk [vmem:[%s372] sm:$0xff] %vm644, %v641
        %s646 = sand.u32 %s187, 1
        %s647 = scalar_lea.sflag [#allocation4], %s646
        %s648 = sand.u32 %s187, 1
        %s649 = smul.addr %s648, 8
        %s650 = scalar_lea.vmem [#allocation14], %s649
        // Predicated region
        $region77: #{tpu_custom_call.1} parent=47 // pred_check
          %p651 = pneg %p197
        $region78: #{tpu_custom_call.1} parent=47 // pred_check_branch
          %653 = sbr.rel (%p651) target = $region80
        $region79: #{tpu_custom_call.1} parent=47 // pred_region
          %s655 = ssub.s32 128, 128
          %656 = vsyncadd %s647, %s655
          %s657 = smul.addr %s27, 128
          %s658 = scalar_lea.hbm %s7, %s657
          %s660 = sshll.u32 %s650, 4
          %s661 = int_to_ptr.vmem [resolvable:$true] %s660
          %663 = dma.vmem_to_hbm [thread:$0]  %s661, 128, %s658, %s647
        $region80: #{tpu_custom_call.1} parent=47 // pred_fallthru
          _
      $region48: #{tpu_custom_call.1} parent=5 // pred_fallthru
        _
      %p664 = scmp.le.s32.totalorder 2, %s22
      // Predicated region
      $region81: #{tpu_custom_call.1} parent=5 // pred_check
        %p665 = pneg %p664
      $region82: #{tpu_custom_call.1} parent=5 // pred_check_branch
        %667 = sbr.rel (%p665) target = $region84
      $region83: #{tpu_custom_call.1} parent=5 // pred_region
        %s668 = ssub.s32 %s22, 2
        // Predicated region
        $region85: #{tpu_custom_call.1} parent=83 // pred_check
          %p669 = pneg %p203
        $region86: #{tpu_custom_call.1} parent=83 // pred_check_branch
          %671 = sbr.rel (%p669) target = $region88
        $region87: #{tpu_custom_call.1} parent=83 // pred_region
          %s672 = sand.u32 %s188, 1
          %s673 = scalar_lea.sflag [#allocation4], %s672
          %s674 = sand.u32 %s188, 1
          %s675 = smul.addr %s674, 8
          %s676 = scalar_lea.vmem [#allocation14], %s675
          %677 = dma.done %s673, 128
        $region88: #{tpu_custom_call.1} parent=83 // pred_fallthru
          _
      $region84: #{tpu_custom_call.1} parent=5 // pred_fallthru
        _
    $region6: #{tpu_custom_call.1} parent=1 // loop_footer
      %s26 = sadd.s32 1, %s22
    $region7: #{tpu_custom_call.1} parent=1 // loop_footer_branch
      %21 = sbr.rel target = $region3
    $region8: #{tpu_custom_call.1} parent=1 // loop_exit
      _
    %678 = vsyncpa [#allocation3], 1
    %s679 = scalar_lea.sflag [#allocation3], 1
    %680 = vsyncpa %s679, 1
    %681 = vsyncpa [#allocation6], 1
    %682 = vsyncpa [#allocation9], 1
    %683 = vsyncpa [#allocation12], 1
    %684 = vsyncpa [#allocation4], 1
    %s685 = scalar_lea.sflag [#allocation4], 1
    %686 = vsyncpa %s685, 1

</llo_original>
